<compile_context>
chip_gen: v7x
topology: tpu7x:2x2x1
jax: 0.10.0
libtpu: 0.0.40
codegen_flags: <defaults>
</compile_context>

<pallas_src>
import functools

import jax
import jax.numpy as jnp
from jax.experimental import pallas as pl
from jax.experimental.pallas import tpu as pltpu


def _outer_product_kernel(x1_ref, x2_ref, o_ref, *, m_dim, n_dim):
    """x1_ref: (TB, M), x2_ref: (TB, N), o_ref: (TB, M*N).

    Writes o[t, m*N + n] = x1[t, m] * x2[t, n] (per-row outer product, flattened
    along the lane axis so the output block stays lane-dense in VMEM/HBM).
    """
    x2 = x2_ref[...].astype(jnp.float32)                      # (TB, N)
    for m in range(m_dim):                                    # static, trace-time loop
        col = x1_ref[:, m:m + 1].astype(jnp.float32)          # (TB, 1): lane broadcast
        o_ref[:, m * n_dim:(m + 1) * n_dim] = (col * x2).astype(o_ref.dtype)


def _round_up(x, mult):
    return ((x + mult - 1) // mult) * mult


def _choose_block_rows(bc, m, n, itemsize):
    """Pick TB (rows per grid step): multiple of 8, big enough to amortize per-step
    overhead, small enough that double-buffered blocks fit comfortably in VMEM
    (accounting for lane padding of narrow input blocks)."""
    per_row_phys = (_round_up(m, 128) + _round_up(n, 128) + _round_up(m * n, 128)) * itemsize
    budget = 8 * 1024 * 1024          # per buffer set; x2 for double buffering => <=16 MiB
    tb = budget // max(per_row_phys, 1)
    tb = min(tb, 8192, _round_up(bc, 8))
    tb = max(8, (tb // 8) * 8)
    return tb


def a_mult_layer(x1, x2):
    """Pallas equivalent of A_Mult_Layer.forward: [B,C,M] x [B,C,N] -> [B,C,M,N]."""
    B, C, M = x1.shape
    B2, C2, N = x2.shape
    assert (B, C) == (B2, C2), "batch/channel dims must match"
    assert x1.dtype == x2.dtype, "inputs must share a dtype"

    dtype = x1.dtype
    itemsize = jnp.dtype(dtype).itemsize
    BC = B * C
    K = M * N

    # Lane-dense 2-D views; reshapes here are metadata-only (contiguous row-major).
    x1_2d = x1.reshape(BC, M)
    x2_2d = x2.reshape(BC, N)

    TB = _choose_block_rows(BC, M, N, itemsize)
    grid = (pl.cdiv(BC, TB),)

    kernel = functools.partial(_outer_product_kernel, m_dim=M, n_dim=N)

    cost = pl.CostEstimate(
        flops=BC * K,
        transcendentals=0,
        bytes_accessed=itemsize * (BC * M + BC * N + BC * K),
    )

    out_flat = pl.pallas_call(
        kernel,
        out_shape=jax.ShapeDtypeStruct((BC, K), dtype),
        grid_spec=pl.GridSpec(
            grid=grid,
            in_specs=[
                pl.BlockSpec((TB, M), lambda i: (i, 0)),
                pl.BlockSpec((TB, N), lambda i: (i, 0)),
            ],
            out_specs=pl.BlockSpec((TB, K), lambda i: (i, 0)),
        ),
        compiler_params=pltpu.CompilerParams(
            dimension_semantics=("parallel",),
            vmem_limit_bytes=32 * 1024 * 1024,
        ),
        cost_estimate=cost,
    )(x1_2d, x2_2d)

    # (BC, M*N) row-major == (B, C, M, N) row-major: free reshape.
    return out_flat.reshape(B, C, M, N)


if __name__ == "__main__":
    key = jax.random.PRNGKey(0)
    k1, k2 = jax.random.split(key)

    B, C, M, N = 2, 4, 8, 16
    x1 = jax.random.normal(k1, (B, C, M), dtype=jnp.float32)
    x2 = jax.random.normal(k2, (B, C, N), dtype=jnp.float32)

    out = a_mult_layer(x1, x2)
    out = jax.block_until_ready(out)

    # Reference: torch.unsqueeze(x1,3) @ torch.unsqueeze(x2,2) == per-row outer product.
    ref = x1[..., :, None] * x2[..., None, :]
    assert out.shape == (B, C, M, N)
    assert jnp.allclose(out, ref, atol=1e-6, rtol=1e-6)

    print("KERNEL_OK")
</pallas_src>

<mosaic_0001>
module attributes {stable_mosaic.version = 11 : i64} {
  func.func @_outer_product_kernel(%arg0: i32, %arg1: memref<8x8xf32, #tpu.memory_space<vmem>>, %arg2: memref<8x16xf32, #tpu.memory_space<vmem>>, %arg3: memref<8x128xf32, #tpu.memory_space<vmem>>) attributes {dimension_semantics = [#tpu.dimension_semantics<parallel>], iteration_bounds = array<i64: 1>, scalar_prefetch = 0 : i64, scratch_operands = 0 : i64, tpu.core_type = #tpu.core_type<tc>, window_params = [{transform_indices = @transform_0, window_bounds = array<i64: 8, 8>}, {transform_indices = @transform_1, window_bounds = array<i64: 8, 16>}, {transform_indices = @transform_2, window_bounds = array<i64: 8, 128>}]} {
    %c0 = arith.constant 0 : index
    %c0_0 = arith.constant 0 : index
    %0 = vector.load %arg2[%c0, %c0_0] : memref<8x16xf32, #tpu.memory_space<vmem>>, vector<8x16xf32>
    %c0_1 = arith.constant 0 : index
    %c0_2 = arith.constant 0 : index
    %1 = vector.load %arg1[%c0_1, %c0_2] : memref<8x8xf32, #tpu.memory_space<vmem>>, vector<8x1xf32>
    %2 = vector.broadcast %1 : vector<8x1xf32> to vector<8x16xf32>
    %3 = arith.mulf %2, %0 : vector<8x16xf32>
    %c0_3 = arith.constant 0 : index
    %c0_4 = arith.constant 0 : index
    %4 = vector.load %arg3[%c0_3, %c0_4] : memref<8x128xf32, #tpu.memory_space<vmem>>, vector<8x16xf32>
    tpu.vector_store %arg3[%c0_3, %c0_4], %3 {strides = array<i32>} : memref<8x128xf32, #tpu.memory_space<vmem>>, vector<8x16xf32>,
    %c0_5 = arith.constant 0 : index
    %c1 = arith.constant 1 : index
    %5 = vector.load %arg1[%c0_5, %c1] : memref<8x8xf32, #tpu.memory_space<vmem>>, vector<8x1xf32>
    %6 = vector.broadcast %5 : vector<8x1xf32> to vector<8x16xf32>
    %7 = arith.mulf %6, %0 : vector<8x16xf32>
    %c0_6 = arith.constant 0 : index
    %c16 = arith.constant 16 : index
    %8 = vector.load %arg3[%c0_6, %c16] : memref<8x128xf32, #tpu.memory_space<vmem>>, vector<8x16xf32>
    tpu.vector_store %arg3[%c0_6, %c16], %7 {strides = array<i32>} : memref<8x128xf32, #tpu.memory_space<vmem>>, vector<8x16xf32>,
    %c0_7 = arith.constant 0 : index
    %c2 = arith.constant 2 : index
    %9 = vector.load %arg1[%c0_7, %c2] : memref<8x8xf32, #tpu.memory_space<vmem>>, vector<8x1xf32>
    %10 = vector.broadcast %9 : vector<8x1xf32> to vector<8x16xf32>
    %11 = arith.mulf %10, %0 : vector<8x16xf32>
    %c0_8 = arith.constant 0 : index
    %c32 = arith.constant 32 : index
    %12 = vector.load %arg3[%c0_8, %c32] : memref<8x128xf32, #tpu.memory_space<vmem>>, vector<8x16xf32>
    tpu.vector_store %arg3[%c0_8, %c32], %11 {strides = array<i32>} : memref<8x128xf32, #tpu.memory_space<vmem>>, vector<8x16xf32>,
    %c0_9 = arith.constant 0 : index
    %c3 = arith.constant 3 : index
    %13 = vector.load %arg1[%c0_9, %c3] : memref<8x8xf32, #tpu.memory_space<vmem>>, vector<8x1xf32>
    %14 = vector.broadcast %13 : vector<8x1xf32> to vector<8x16xf32>
    %15 = arith.mulf %14, %0 : vector<8x16xf32>
    %c0_10 = arith.constant 0 : index
    %c48 = arith.constant 48 : index
    %16 = vector.load %arg3[%c0_10, %c48] : memref<8x128xf32, #tpu.memory_space<vmem>>, vector<8x16xf32>
    tpu.vector_store %arg3[%c0_10, %c48], %15 {strides = array<i32>} : memref<8x128xf32, #tpu.memory_space<vmem>>, vector<8x16xf32>,
    %c0_11 = arith.constant 0 : index
    %c4 = arith.constant 4 : index
    %17 = vector.load %arg1[%c0_11, %c4] : memref<8x8xf32, #tpu.memory_space<vmem>>, vector<8x1xf32>
    %18 = vector.broadcast %17 : vector<8x1xf32> to vector<8x16xf32>
    %19 = arith.mulf %18, %0 : vector<8x16xf32>
    %c0_12 = arith.constant 0 : index
    %c64 = arith.constant 64 : index
    %20 = vector.load %arg3[%c0_12, %c64] : memref<8x128xf32, #tpu.memory_space<vmem>>, vector<8x16xf32>
    tpu.vector_store %arg3[%c0_12, %c64], %19 {strides = array<i32>} : memref<8x128xf32, #tpu.memory_space<vmem>>, vector<8x16xf32>,
    %c0_13 = arith.constant 0 : index
    %c5 = arith.constant 5 : index
    %21 = vector.load %arg1[%c0_13, %c5] : memref<8x8xf32, #tpu.memory_space<vmem>>, vector<8x1xf32>
    %22 = vector.broadcast %21 : vector<8x1xf32> to vector<8x16xf32>
    %23 = arith.mulf %22, %0 : vector<8x16xf32>
    %c0_14 = arith.constant 0 : index
    %c80 = arith.constant 80 : index
    %24 = vector.load %arg3[%c0_14, %c80] : memref<8x128xf32, #tpu.memory_space<vmem>>, vector<8x16xf32>
    tpu.vector_store %arg3[%c0_14, %c80], %23 {strides = array<i32>} : memref<8x128xf32, #tpu.memory_space<vmem>>, vector<8x16xf32>,
    %c0_15 = arith.constant 0 : index
    %c6 = arith.constant 6 : index
    %25 = vector.load %arg1[%c0_15, %c6] : memref<8x8xf32, #tpu.memory_space<vmem>>, vector<8x1xf32>
    %26 = vector.broadcast %25 : vector<8x1xf32> to vector<8x16xf32>
    %27 = arith.mulf %26, %0 : vector<8x16xf32>
    %c0_16 = arith.constant 0 : index
    %c96 = arith.constant 96 : index
    %28 = vector.load %arg3[%c0_16, %c96] : memref<8x128xf32, #tpu.memory_space<vmem>>, vector<8x16xf32>
    tpu.vector_store %arg3[%c0_16, %c96], %27 {strides = array<i32>} : memref<8x128xf32, #tpu.memory_space<vmem>>, vector<8x16xf32>,
    %c0_17 = arith.constant 0 : index
    %c7 = arith.constant 7 : index
    %29 = vector.load %arg1[%c0_17, %c7] : memref<8x8xf32, #tpu.memory_space<vmem>>, vector<8x1xf32>
    %30 = vector.broadcast %29 : vector<8x1xf32> to vector<8x16xf32>
    %31 = arith.mulf %30, %0 : vector<8x16xf32>
    %c0_18 = arith.constant 0 : index
    %c112 = arith.constant 112 : index
    %32 = vector.load %arg3[%c0_18, %c112] : memref<8x128xf32, #tpu.memory_space<vmem>>, vector<8x16xf32>
    tpu.vector_store %arg3[%c0_18, %c112], %31 {strides = array<i32>} : memref<8x128xf32, #tpu.memory_space<vmem>>, vector<8x16xf32>,
    return
  }
  func.func @transform_0(%arg0: i32) -> (i32, i32) {
    %c0_i32 = arith.constant 0 : i32
    %c0_i32_0 = arith.constant 0 : i32
    return %arg0, %c0_i32 : i32, i32
  }
  func.func @transform_1(%arg0: i32) -> (i32, i32) {
    %c0_i32 = arith.constant 0 : i32
    %c0_i32_0 = arith.constant 0 : i32
    return %arg0, %c0_i32 : i32, i32
  }
  func.func @transform_2(%arg0: i32) -> (i32, i32) {
    %c0_i32 = arith.constant 0 : i32
    %c0_i32_0 = arith.constant 0 : i32
    return %arg0, %c0_i32 : i32, i32
  }
}

</mosaic_0001>

<llo_original>
// kernel: tpu_custom_call.1
$region0: #{tpu_custom_call.1}
  #allocation0 [shape = 'u32[]', space=smem, size = 0x4, offset = 0x4, fixed_abs, tag = 'smem constant byte address 0x4 - core index']
  #allocation1 [shape = 'u32[144,128]{1,0:T(1,128)}', space=vmem, size = 0x12000, scoped, tag = 'internal scratch']
  %s0 = inlined_call_operand.hbm [shape: f32[8,8], index: 0, kind: input, shape index: {}]
  %s1 = inlined_call_operand.hbm [shape: f32[8,16], index: 1, kind: input, shape index: {}]
  %s2 = inlined_call_operand.hbm [shape: f32[8,128], index: 2, kind: output, shape index: {}]
  %s3 = sld [smem:[#allocation0]]
  $region26: #{tpu_custom_call.1} parent=0
    _
  %s5 = ssub.s32 1, %s3
  %s6 = scalar_select 0, %s5, %s3
  $region1: #{tpu_custom_call.1} parent=0
    #allocation2 [shape = 'u8[4096]{0}', space=vmem, size = 0x1000, scoped, tag = 'input window, operand 0, single buffered']
    #allocation3 [shape = 's32[1]{0}', space=sflag, size = 0x4, scoped, tag = 'scoped memory for tpu_custom_call.1']
    #allocation4 [shape = 's32[1]{0}', space=sflag, size = 0x4, scoped, tag = 'scoped memory for tpu_custom_call.1']
    #allocation5 [shape = 'u8[4096]{0}', space=vmem, size = 0x1000, scoped, tag = 'input window, operand 1, single buffered']
    #allocation6 [shape = 's32[1]{0}', space=sflag, size = 0x4, scoped, tag = 'scoped memory for tpu_custom_call.1']
    #allocation7 [shape = 'u8[4096]{0}', space=vmem, size = 0x1000, scoped, tag = 'output window, operand 0, single buffered']
    %7 = vsyncpa [#allocation3], 0
    %8 = vsyncpa [#allocation6], 0
    %9 = vsyncpa [#allocation4], 0
    // Predicated region
    $region2: #{tpu_custom_call.1} parent=1 // pred_check
      _
    $region3: #{tpu_custom_call.1} parent=1 // pred_check_branch
      %11 = sbr.rel (0) target = $region5
    $region4: #{tpu_custom_call.1} parent=1 // pred_region
      %s13 = ssub.s32 128, 128
      %14 = vsyncadd [#allocation3], %s13
      %s16 = sshll.u32 [#allocation2], 4
      %s17 = int_to_ptr.vmem [resolvable:$true] %s16
      %19 = dma.hbm_to_vmem [thread:$0]  %s0, 128, %s17, [#allocation3]
    $region5: #{tpu_custom_call.1} parent=1 // pred_fallthru
      _
    // Predicated region
    $region6: #{tpu_custom_call.1} parent=1 // pred_check
      _
    $region7: #{tpu_custom_call.1} parent=1 // pred_check_branch
      %21 = sbr.rel (0) target = $region9
    $region8: #{tpu_custom_call.1} parent=1 // pred_region
      %s23 = ssub.s32 128, 128
      %24 = vsyncadd [#allocation6], %s23
      %s26 = sshll.u32 [#allocation5], 4
      %s27 = int_to_ptr.vmem [resolvable:$true] %s26
      %29 = dma.hbm_to_vmem [thread:$0]  %s1, 128, %s27, [#allocation6]
    $region9: #{tpu_custom_call.1} parent=1 // pred_fallthru
      _
    // Predicated region
    $region10: #{tpu_custom_call.1} parent=1 // pred_check
      _
    $region11: #{tpu_custom_call.1} parent=1 // pred_check_branch
      %31 = sbr.rel (0) target = $region13
    $region12: #{tpu_custom_call.1} parent=1 // pred_region
      %32 = dma.done [#allocation3], 128
    $region13: #{tpu_custom_call.1} parent=1 // pred_fallthru
      _
    // Predicated region
    $region14: #{tpu_custom_call.1} parent=1 // pred_check
      _
    $region15: #{tpu_custom_call.1} parent=1 // pred_check_branch
      %34 = sbr.rel (0) target = $region17
    $region16: #{tpu_custom_call.1} parent=1 // pred_region
      %35 = dma.done [#allocation6], 128
    $region17: #{tpu_custom_call.1} parent=1 // pred_fallthru
      _
    %v36 = vld [vmem:[#allocation5] sm:$0xff]
    %v37 = vld [vmem:[#allocation2] sm:$0xff]
    %39 = vset.pattern.permute.xlu0 0
    %40 = vperm.xlu0 %39, %v37
    %v41 = vpop.permute.xlu0 %40
    %v43 = vmul.f32 %v41, %v36
    %vm44 = vcmask 130048
    %45 = vst.msk [vmem:[#allocation7] sm:$0xff] %vm44, %v43
    %v46 = vld [vmem:[#allocation2] sm:$0xff]
    %48 = vset.pattern.permute.xlu0 1
    %49 = vperm.xlu0 %48, %v46
    %v50 = vpop.permute.xlu0 %49
    %v52 = vmul.f32 %v50, %v36
    %54 = vrot.lane.b32.xlu0 %v52, 16
    %v55 = vpop.permute.xlu0 %54
    %vm57 = vcmask 261248
    %58 = vst.msk [vmem:[#allocation7] sm:$0xff] %vm57, %v55
    %v59 = vld [vmem:[#allocation2] sm:$0xff]
    %61 = vset.pattern.permute.xlu0 2
    %62 = vperm.xlu0 %61, %v59
    %v63 = vpop.permute.xlu0 %62
    %v65 = vmul.f32 %v63, %v36
    %67 = vrot.lane.b32.xlu0 %v65, 32
    %v68 = vpop.permute.xlu0 %67
    %vm70 = vcmask 392448
    %71 = vst.msk [vmem:[#allocation7] sm:$0xff] %vm70, %v68
    %v72 = vld [vmem:[#allocation2] sm:$0xff]
    %74 = vset.pattern.permute.xlu0 3
    %75 = vperm.xlu0 %74, %v72
    %v76 = vpop.permute.xlu0 %75
    %v78 = vmul.f32 %v76, %v36
    %80 = vrot.lane.b32.xlu0 %v78, 48
    %v81 = vpop.permute.xlu0 %80
    %vm83 = vcmask 523648
    %84 = vst.msk [vmem:[#allocation7] sm:$0xff] %vm83, %v81
    %v85 = vld [vmem:[#allocation2] sm:$0xff]
    %87 = vset.pattern.permute.xlu0 4
    %88 = vperm.xlu0 %87, %v85
    %v89 = vpop.permute.xlu0 %88
    %v91 = vmul.f32 %v89, %v36
    %93 = vrot.lane.b32.xlu0 %v91, 64
    %v94 = vpop.permute.xlu0 %93
    %vm96 = vcmask 654848
    %97 = vst.msk [vmem:[#allocation7] sm:$0xff] %vm96, %v94
    %v98 = vld [vmem:[#allocation2] sm:$0xff]
    %100 = vset.pattern.permute.xlu0 5
    %101 = vperm.xlu0 %100, %v98
    %v102 = vpop.permute.xlu0 %101
    %v104 = vmul.f32 %v102, %v36
    %106 = vrot.lane.b32.xlu0 %v104, 80
    %v107 = vpop.permute.xlu0 %106
    %vm109 = vcmask 786048
    %110 = vst.msk [vmem:[#allocation7] sm:$0xff] %vm109, %v107
    %v111 = vld [vmem:[#allocation2] sm:$0xff]
    %113 = vset.pattern.permute.xlu0 6
    %114 = vperm.xlu0 %113, %v111
    %v115 = vpop.permute.xlu0 %114
    %v117 = vmul.f32 %v115, %v36
    %119 = vrot.lane.b32.xlu0 %v117, 96
    %v120 = vpop.permute.xlu0 %119
    %vm122 = vcmask 917248
    %123 = vst.msk [vmem:[#allocation7] sm:$0xff] %vm122, %v120
    %v124 = vld [vmem:[#allocation2] sm:$0xff]
    %126 = vset.pattern.permute.xlu0 7
    %127 = vperm.xlu0 %126, %v124
    %v128 = vpop.permute.xlu0 %127
    %v130 = vmul.f32 %v128, %v36
    %132 = vrot.lane.b32.xlu0 %v130, 112
    %v133 = vpop.permute.xlu0 %132
    %vm135 = vcmask 1048448
    %136 = vst.msk [vmem:[#allocation7] sm:$0xff] %vm135, %v133
    // Predicated region
    $region18: #{tpu_custom_call.1} parent=1 // pred_check
      _
    $region19: #{tpu_custom_call.1} parent=1 // pred_check_branch
      %138 = sbr.rel (0) target = $region21
    $region20: #{tpu_custom_call.1} parent=1 // pred_region
      %s140 = ssub.s32 128, 128
      %141 = vsyncadd [#allocation4], %s140
      %s143 = sshll.u32 [#allocation7], 4
      %s144 = int_to_ptr.vmem [resolvable:$true] %s143
      %146 = dma.vmem_to_hbm [thread:$0]  %s144, 128, %s2, [#allocation4]
    $region21: #{tpu_custom_call.1} parent=1 // pred_fallthru
      _
    // Predicated region
    $region22: #{tpu_custom_call.1} parent=1 // pred_check
      _
    $region23: #{tpu_custom_call.1} parent=1 // pred_check_branch
      %148 = sbr.rel (0) target = $region25
    $region24: #{tpu_custom_call.1} parent=1 // pred_region
      %149 = dma.done [#allocation4], 128
    $region25: #{tpu_custom_call.1} parent=1 // pred_fallthru
      _
    %150 = vsyncpa [#allocation3], 1
    %151 = vsyncpa [#allocation6], 1
    %152 = vsyncpa [#allocation4], 1

</llo_original>
